<compile_context>
chip_gen: v7x
topology: tpu7x:2x2x1
jax: 0.10.0
libtpu: 0.0.40
codegen_flags: <defaults>
</compile_context>

<pallas_src>
import functools

import jax
import jax.numpy as jnp
from jax import lax
from jax.experimental import pallas as pl
from jax.experimental.pallas import tpu as pltpu


def _num_tensorcores() -> int:
    """Best-effort TensorCore count per chip (2 on v7x, 1 on v5e/v6e)."""
    try:
        d = jax.devices()[0]
        n = getattr(d, "num_cores", 1) or 1
        return max(1, int(n))
    except Exception:
        return 1


def _two_layer_kernel(u_ref, v_ref, x_ref, o_ref, *, activation: str):
    # Hidden layer: V.T @ x expressed as a dim-0/dim-0 contraction, so the
    # transpose of V is never materialized (no XLU / VMEM copy).
    h = lax.dot_general(
        v_ref[...], x_ref[...],
        dimension_numbers=(((0,), (0,)), ((), ())),
        preferred_element_type=jnp.float32,
    )

    # Elementwise activation in f32.
    if activation == "relu":
        h = jnp.maximum(h, 0.0)                    # VPU
    elif activation == "tanh":
        h = jnp.tanh(h)                            # EUP
    elif activation == "sigmoid":
        h = 0.5 * (jnp.tanh(0.5 * h) + 1.0)        # EUP-only, no VALU divide
    # else: identity (matches the PyTorch module's fall-through)

    # Output layer: U @ h, f32 accumulation on the MXU.
    o_ref[...] = jnp.dot(
        u_ref[...], h, preferred_element_type=jnp.float32
    ).astype(o_ref.dtype)


def two_layer_elementwise(U, V, x, activation: str, *, num_tiles=None):
    """out = U @ act(V.T @ x), computed in a single Pallas kernel."""
    M, H = U.shape
    D, H2 = V.shape
    D2, N = x.shape
    assert H == H2 and D == D2

    # Grid sizing: one step per TensorCore.  Only split the N axis when every
    # tile stays a clean multiple of 128 lanes and divides N exactly;
    # otherwise a single full-width step is fastest (per-step overhead
    # dominates at these sizes, and tn == N keeps the store lane-dense).
    if num_tiles is None:
        num_tiles = _num_tensorcores()
    if num_tiles > 1 and N % (128 * num_tiles) == 0:
        tn = N // num_tiles
    else:
        num_tiles = 1
        tn = N
    grid = (num_tiles,)

    itemsize = jnp.dtype(x.dtype).itemsize
    cost = pl.CostEstimate(
        flops=2 * H * N * (D + M),
        transcendentals=H * N if activation in ("tanh", "sigmoid") else 0,
        bytes_accessed=(U.size + V.size + x.size + M * N) * itemsize,
    )

    return pl.pallas_call(
        functools.partial(_two_layer_kernel, activation=activation),
        out_shape=jax.ShapeDtypeStruct((M, N), x.dtype),
        grid=grid,
        in_specs=[
            # Weights: constant block index -> DMA'd once, VMEM-resident.
            # block_shape equal to the full array dims needs no padding.
            pl.BlockSpec((M, H), lambda j: (0, 0)),
            pl.BlockSpec((D, H), lambda j: (0, 0)),
            # Activations: one (or one-per-core) full-height column tile.
            pl.BlockSpec((D, tn), lambda j: (0, j)),
        ],
        out_specs=pl.BlockSpec((M, tn), lambda j: (0, j)),
        compiler_params=pltpu.CompilerParams(
            dimension_semantics=("parallel",),
        ),
        cost_estimate=cost,
    )(U, V, x)


def _reference(U, V, x, activation):
    h = V.T @ x
    if activation == "relu":
        h = jnp.maximum(h, 0.0)
    elif activation == "tanh":
        h = jnp.tanh(h)
    elif activation == "sigmoid":
        h = jax.nn.sigmoid(h)
    return U @ h


if __name__ == "__main__":
    # Deterministic parameter / input init (synthetic, no checkpoint load).
    key = jax.random.PRNGKey(0)
    kU, kV, kx = jax.random.split(key, 3)

    # U:(M,H)  V:(D,H)  x:(D,N).  All dims already lane/sublane friendly, so
    # the wrapper does zero padding or slicing around the pallas_call.
    M, D, H, N = 32, 32, 64, 512
    U = jax.random.normal(kU, (M, H), dtype=jnp.float32) * 0.1
    V = jax.random.normal(kV, (D, H), dtype=jnp.float32) * 0.1
    x = jax.random.normal(kx, (D, N), dtype=jnp.float32)

    activation = "tanh"

    out = two_layer_elementwise(U, V, x, activation)
    out = jax.block_until_ready(out)

    ref = _reference(U, V, x, activation)
    assert out.shape == (M, N)
    assert jnp.allclose(out, ref, atol=1e-4, rtol=1e-4), "mismatch vs reference"

    # Also sanity-check the other activation branches against the reference.
    for act in ("relu", "sigmoid", "none"):
        o = jax.block_until_ready(two_layer_elementwise(U, V, x, act))
        r = _reference(U, V, x, act)
        assert jnp.allclose(o, r, atol=1e-4, rtol=1e-4), f"mismatch for {act}"

    print("KERNEL_OK")
</pallas_src>

<mosaic_0001>
module attributes {stable_mosaic.version = 11 : i64} {
  func.func @_two_layer_kernel(%arg0: i32, %arg1: memref<32x64xf32, #tpu.memory_space<vmem>>, %arg2: memref<32x64xf32, #tpu.memory_space<vmem>>, %arg3: memref<32x512xf32, #tpu.memory_space<vmem>>, %arg4: memref<32x512xf32, #tpu.memory_space<vmem>>) attributes {dimension_semantics = [#tpu.dimension_semantics<parallel>], iteration_bounds = array<i64: 1>, scalar_prefetch = 0 : i64, scratch_operands = 0 : i64, tpu.core_type = #tpu.core_type<tc>, window_params = [{pipeline_mode = #tpu.pipeline_mode<synchronous>, transform_indices = @transform_0, window_bounds = array<i64: 32, 64>}, {pipeline_mode = #tpu.pipeline_mode<synchronous>, transform_indices = @transform_1, window_bounds = array<i64: 32, 64>}, {transform_indices = @transform_2, window_bounds = array<i64: 32, 512>}, {transform_indices = @transform_3, window_bounds = array<i64: 32, 512>}]} {
    %c0 = arith.constant 0 : index
    %c0_0 = arith.constant 0 : index
    %0 = vector.load %arg2[%c0, %c0_0] : memref<32x64xf32, #tpu.memory_space<vmem>>, vector<32x64xf32>
    %c0_1 = arith.constant 0 : index
    %c0_2 = arith.constant 0 : index
    %1 = vector.load %arg3[%c0_1, %c0_2] : memref<32x512xf32, #tpu.memory_space<vmem>>, vector<32x512xf32>
    %cst = arith.constant dense<0.000000e+00> : vector<64x512xf32>
    %2 = tpu.matmul %0, %1, %cst {dimension_numbers = #tpu.dot_dimension_numbers<[0], [0], [1], [1], [0, 1, 1, 1], [], []>} : vector<32x64xf32>, vector<32x512xf32>, vector<64x512xf32> -> vector<64x512xf32>
    %3 = math.tanh %2 : vector<64x512xf32>
    %c0_3 = arith.constant 0 : index
    %c0_4 = arith.constant 0 : index
    %4 = vector.load %arg1[%c0_3, %c0_4] : memref<32x64xf32, #tpu.memory_space<vmem>>, vector<32x64xf32>
    %cst_5 = arith.constant dense<0.000000e+00> : vector<32x512xf32>
    %5 = tpu.matmul %4, %3, %cst_5 {dimension_numbers = #tpu.dot_dimension_numbers<[1], [0], [0], [1], [0, 0, 1, 1], [], []>} : vector<32x64xf32>, vector<64x512xf32>, vector<32x512xf32> -> vector<32x512xf32>
    %c0_6 = arith.constant 0 : index
    %c0_7 = arith.constant 0 : index
    %6 = vector.load %arg4[%c0_6, %c0_7] : memref<32x512xf32, #tpu.memory_space<vmem>>, vector<32x512xf32>
    tpu.vector_store %arg4[%c0_6, %c0_7], %5 {strides = array<i32>} : memref<32x512xf32, #tpu.memory_space<vmem>>, vector<32x512xf32>,
    return
  }
  func.func @transform_0(%arg0: i32) -> (i32, i32) {
    %c0_i32 = arith.constant 0 : i32
    %c0_i32_0 = arith.constant 0 : i32
    %c0_i32_1 = arith.constant 0 : i32
    return %c0_i32, %c0_i32_0 : i32, i32
  }
  func.func @transform_1(%arg0: i32) -> (i32, i32) {
    %c0_i32 = arith.constant 0 : i32
    %c0_i32_0 = arith.constant 0 : i32
    %c0_i32_1 = arith.constant 0 : i32
    return %c0_i32, %c0_i32_0 : i32, i32
  }
  func.func @transform_2(%arg0: i32) -> (i32, i32) {
    %c0_i32 = arith.constant 0 : i32
    %c0_i32_0 = arith.constant 0 : i32
    return %c0_i32, %arg0 : i32, i32
  }
  func.func @transform_3(%arg0: i32) -> (i32, i32) {
    %c0_i32 = arith.constant 0 : i32
    %c0_i32_0 = arith.constant 0 : i32
    return %c0_i32, %arg0 : i32, i32
  }
}

</mosaic_0001>

<llo_original>
// kernel: tpu_custom_call.1
$region0: #{tpu_custom_call.1}
  #allocation0 [shape = 'u32[]', space=smem, size = 0x4, offset = 0x4, fixed_abs, tag = 'smem constant byte address 0x4 - core index']
  #allocation1 [shape = 'u32[144,128]{1,0:T(1,128)}', space=vmem, size = 0x12000, scoped, tag = 'internal scratch']
  %s0 = inlined_call_operand.hbm [shape: f32[32,64], index: 0, kind: input, shape index: {}]
  %s1 = inlined_call_operand.hbm [shape: f32[32,64], index: 1, kind: input, shape index: {}]
  %s2 = inlined_call_operand.hbm [shape: f32[32,512], index: 2, kind: input, shape index: {}]
  %s3 = inlined_call_operand.hbm [shape: f32[32,512], index: 3, kind: output, shape index: {}]
  %s4 = sld [smem:[#allocation0]]
  $region34: #{tpu_custom_call.1} parent=0
    _
  %s6 = ssub.s32 1, %s4
  %s7 = scalar_select 0, %s6, %s4
  $region1: #{tpu_custom_call.1} parent=0
    #allocation2 [shape = 'u8[16384]{0}', space=vmem, size = 0x4000, scoped, tag = 'input window, operand 0, single buffered']
    #allocation3 [shape = 's32[1]{0}', space=sflag, size = 0x4, scoped, tag = 'scoped memory for tpu_custom_call.1']
    #allocation4 [shape = 's32[1]{0}', space=sflag, size = 0x4, scoped, tag = 'scoped memory for tpu_custom_call.1']
    #allocation5 [shape = 'u8[16384]{0}', space=vmem, size = 0x4000, scoped, tag = 'input window, operand 1, single buffered']
    #allocation6 [shape = 's32[1]{0}', space=sflag, size = 0x4, scoped, tag = 'scoped memory for tpu_custom_call.1']
    #allocation7 [shape = 'u8[65536]{0}', space=vmem, size = 0x10000, scoped, tag = 'input window, operand 2, single buffered']
    #allocation8 [shape = 'u8[65536]{0}', space=vmem, size = 0x10000, scoped, tag = 'output window, operand 0, single buffered']
    %8 = vsyncpa [#allocation3], 0
    %9 = vsyncpa [#allocation6], 0
    %10 = vsyncpa [#allocation4], 0
    // Predicated region
    $region2: #{tpu_custom_call.1} parent=1 // pred_check
      _
    $region3: #{tpu_custom_call.1} parent=1 // pred_check_branch
      %12 = sbr.rel (0) target = $region5
    $region4: #{tpu_custom_call.1} parent=1 // pred_region
      %s14 = ssub.s32 512, 512
      %15 = vsyncadd [#allocation3], %s14
      %s16 = sshll.u32 [#allocation2], 4
      %s17 = int_to_ptr.vmem [resolvable:$true] %s16
      %22 = dma.hbm_to_vmem [thread:$0]  %s0, 512, %s17, [#allocation3], 128, 128, 8
    $region5: #{tpu_custom_call.1} parent=1 // pred_fallthru
      _
    // Predicated region
    $region6: #{tpu_custom_call.1} parent=1 // pred_check
      _
    $region7: #{tpu_custom_call.1} parent=1 // pred_check_branch
      %24 = sbr.rel (0) target = $region9
    $region8: #{tpu_custom_call.1} parent=1 // pred_region
      %s26 = ssub.s32 512, 512
      %27 = vsyncadd [#allocation6], %s26
      %s28 = sshll.u32 [#allocation5], 4
      %s29 = int_to_ptr.vmem [resolvable:$true] %s28
      %34 = dma.hbm_to_vmem [thread:$0]  %s1, 512, %s29, [#allocation6], 128, 128, 8
    $region9: #{tpu_custom_call.1} parent=1 // pred_fallthru
      _
    // Predicated region
    $region10: #{tpu_custom_call.1} parent=1 // pred_check
      _
    $region11: #{tpu_custom_call.1} parent=1 // pred_check_branch
      %36 = sbr.rel (0) target = $region13
    $region12: #{tpu_custom_call.1} parent=1 // pred_region
      %s38 = ssub.s32 2048, 2048
      %39 = vsyncadd [#allocation6], %s38
      %s40 = sshll.u32 [#allocation7], 4
      %s41 = int_to_ptr.vmem [resolvable:$true] %s40
      %46 = dma.hbm_to_vmem [thread:$0]  %s2, 2048, %s41, [#allocation6], 512, 512, 32
    $region13: #{tpu_custom_call.1} parent=1 // pred_fallthru
      _
    // Predicated region
    $region14: #{tpu_custom_call.1} parent=1 // pred_check
      _
    $region15: #{tpu_custom_call.1} parent=1 // pred_check_branch
      %48 = sbr.rel (0) target = $region17
    $region16: #{tpu_custom_call.1} parent=1 // pred_region
      %49 = dma.done [#allocation3], 512
    $region17: #{tpu_custom_call.1} parent=1 // pred_fallthru
      _
    // Predicated region
    $region18: #{tpu_custom_call.1} parent=1 // pred_check
      _
    $region19: #{tpu_custom_call.1} parent=1 // pred_check_branch
      %51 = sbr.rel (0) target = $region21
    $region20: #{tpu_custom_call.1} parent=1 // pred_region
      %52 = dma.done [#allocation6], 512
    $region21: #{tpu_custom_call.1} parent=1 // pred_fallthru
      _
    // Predicated region
    $region22: #{tpu_custom_call.1} parent=1 // pred_check
      _
    $region23: #{tpu_custom_call.1} parent=1 // pred_check_branch
      %54 = sbr.rel (0) target = $region25
    $region24: #{tpu_custom_call.1} parent=1 // pred_region
      %55 = dma.done [#allocation6], 2048
    $region25: #{tpu_custom_call.1} parent=1 // pred_fallthru
      _
    %v56 = vld [vmem:[#allocation5] sm:$0xff]
    %v57 = vld [vmem:[#allocation5 + $0x8] sm:$0xff]
    %v58 = vld [vmem:[#allocation5 + $0x10] sm:$0xff]
    %v59 = vld [vmem:[#allocation5 + $0x18] sm:$0xff]
    %v60 = vld [vmem:[#allocation7] sm:$0xff]
    %v61 = vld [vmem:[#allocation7 + $0x8] sm:$0xff]
    %v62 = vld [vmem:[#allocation7 + $0x10] sm:$0xff]
    %v63 = vld [vmem:[#allocation7 + $0x18] sm:$0xff]
    %v64 = vld [vmem:[#allocation7 + $0x20] sm:$0xff]
    %v65 = vld [vmem:[#allocation7 + $0x28] sm:$0xff]
    %v66 = vld [vmem:[#allocation7 + $0x30] sm:$0xff]
    %v67 = vld [vmem:[#allocation7 + $0x38] sm:$0xff]
    %v68 = vld [vmem:[#allocation7 + $0x40] sm:$0xff]
    %v69 = vld [vmem:[#allocation7 + $0x48] sm:$0xff]
    %v70 = vld [vmem:[#allocation7 + $0x50] sm:$0xff]
    %v71 = vld [vmem:[#allocation7 + $0x58] sm:$0xff]
    %v72 = vld [vmem:[#allocation7 + $0x60] sm:$0xff]
    %v73 = vld [vmem:[#allocation7 + $0x68] sm:$0xff]
    %v74 = vld [vmem:[#allocation7 + $0x70] sm:$0xff]
    %v75 = vld [vmem:[#allocation7 + $0x78] sm:$0xff]
    %76 = vxpose.xlu0.b32.start [1/16] %v56, 128
    %77 = vxpose.xlu0.b32.cont [2/16] %v57, 128
    %78 = vxpose.xlu0.b32.cont [3/16] %v58, 128
    %79 = vxpose.xlu0.b32.cont [4/16] %v59, 128
    %80 = vxpose.xlu0.b32.cont [5/16] 0.0, 128
    %81 = vxpose.xlu0.b32.cont [6/16] 0.0, 128
    %82 = vxpose.xlu0.b32.cont [7/16] 0.0, 128
    %83 = vxpose.xlu0.b32.cont [8/16] 0.0, 128
    %84 = vxpose.xlu0.b32.cont [9/16] 0.0, 128
    %85 = vxpose.xlu0.b32.cont [10/16] 0.0, 128
    %86 = vxpose.xlu0.b32.cont [11/16] 0.0, 128
    %87 = vxpose.xlu0.b32.cont [12/16] 0.0, 128
    %88 = vxpose.xlu0.b32.cont [13/16] 0.0, 128
    %89 = vxpose.xlu0.b32.cont [14/16] 0.0, 128
    %90 = vxpose.xlu0.b32.cont [15/16] 0.0, 128
    %91 = vxpose.xlu0.b32.end [16/16] 0.0, 128
    %v92 = vpop.trf.xlu0
    %v93 = vpop.trf.xlu0
    %v94 = vpop.trf.xlu0
    %v95 = vpop.trf.xlu0
    %v96 = vpop.trf.xlu0
    %v97 = vpop.trf.xlu0
    %v98 = vpop.trf.xlu0
    %v99 = vpop.trf.xlu0
    %v100 = vpop.trf.xlu0
    %v101 = vpop.trf.xlu0
    %v102 = vpop.trf.xlu0
    %v103 = vpop.trf.xlu0
    %v104 = vpop.trf.xlu0
    %v105 = vpop.trf.xlu0
    %v106 = vpop.trf.xlu0
    %v107 = vpop.trf.xlu0
    %vm108 = vcmask 261120
    %v110 = vsel %vm108, %v92, 0
    %v113 = vsel %vm108, %v93, 0
    %v116 = vsel %vm108, %v94, 0
    %v119 = vsel %vm108, %v95, 0
    %v122 = vsel %vm108, %v96, 0
    %v125 = vsel %vm108, %v97, 0
    %v128 = vsel %vm108, %v98, 0
    %v131 = vsel %vm108, %v99, 0
    %133 = vmatprep.subr.mxu0 %v61
    %134 = vmatpush1.msra.mxu0 %v60
    %135 = vmatprep.subr.mxu0 %v65
    %136 = vmatpush1.msra.mxu0 %v64
    %137 = vmatprep.subr.mxu0 %v69
    %138 = vmatpush1.msra.mxu0 %v68
    %139 = vmatprep.subr.mxu0 %v73
    %140 = vmatpush1.msra.mxu0 %v72
    %141 = vmatprep.subr.mxu0 0.0
    %142 = vmatpush1.msra.mxu0 0.0
    %143 = vmatprep.subr.mxu0 0.0
    %144 = vmatpush1.msra.mxu0 0.0
    %145 = vmatprep.subr.mxu0 0.0
    %146 = vmatpush1.msra.mxu0 0.0
    %147 = vmatprep.subr.mxu0 0.0
    %148 = vmatpush1.msra.mxu0 0.0
    %149 = vmatprep.subr.mxu0 0.0
    %150 = vmatpush1.msra.mxu0 0.0
    %151 = vmatprep.subr.mxu0 0.0
    %152 = vmatpush1.msra.mxu0 0.0
    %153 = vmatprep.subr.mxu0 0.0
    %154 = vmatpush1.msra.mxu0 0.0
    %155 = vmatprep.subr.mxu0 0.0
    %156 = vmatpush1.msra.mxu0 0.0
    %157 = vmatprep.subr.mxu0 0.0
    %158 = vmatpush1.msra.mxu0 0.0
    %159 = vmatprep.subr.mxu0 0.0
    %160 = vmatpush1.msra.mxu0 0.0
    %161 = vmatprep.subr.mxu0 0.0
    %162 = vmatpush1.msra.mxu0 0.0
    %163 = vmatprep.subr.mxu0 0.0
    %164 = vmatpush1.msra.mxu0 0.0
    %165 = vmatprep.subr.mxu0 0.0
    %166 = vmatpush1.msra.mxu0 0.0
    %167 = vmatprep.subr.mxu0 0.0
    %168 = vmatpush1.msra.mxu0 0.0
    %169 = vmatprep.subr.mxu0 0.0
    %170 = vmatpush1.msra.mxu0 0.0
    %171 = vmatprep.subr.mxu0 0.0
    %172 = vmatpush1.msra.mxu0 0.0
    %173 = vmatprep.subr.mxu0 0.0
    %174 = vmatpush1.msra.mxu0 0.0
    %175 = vmatprep.subr.mxu0 0.0
    %176 = vmatpush1.msra.mxu0 0.0
    %177 = vmatprep.subr.mxu0 0.0
    %178 = vmatpush1.msra.mxu0 0.0
    %179 = vmatprep.subr.mxu0 0.0
    %180 = vmatpush1.msra.mxu0 0.0
    %181 = vmatprep.subr.mxu0 0.0
    %182 = vmatpush1.msra.mxu0 0.0
    %183 = vmatprep.subr.mxu0 0.0
    %184 = vmatpush1.msra.mxu0 0.0
    %185 = vmatprep.subr.mxu0 0.0
    %186 = vmatpush1.msra.mxu0 0.0
    %187 = vmatprep.subr.mxu0 0.0
    %188 = vmatpush1.msra.mxu0 0.0
    %189 = vmatprep.subr.mxu0 0.0
    %190 = vmatpush1.msra.mxu0 0.0
    %191 = vmatprep.subr.mxu0 0.0
    %192 = vmatpush1.msra.mxu0 0.0
    %193 = vmatprep.subr.mxu0 0.0
    %194 = vmatpush1.msra.mxu0 0.0
    %195 = vmatprep.subr.mxu0 0.0
    %196 = vmatpush1.msra.mxu0 0.0
    %197 = vmatprep.mubr.f32.mxu0 0.0
    %198 = vmatmul.mubr.f32.gmra.mrb[0].mxu0 %v110
    %v199 = vpop.f32.mrb[0].mxu0
    %v200 = vadd.f32 0.0, %v199
    %v201 = vpop.f32.mrb[0].mxu0
    %v202 = vadd.f32 0.0, %v201
    %203 = vmatprep.mubr.f32.mxu0 0.0
    %204 = vmatmul.mubr.f32.gmra.mrb[0].mxu0 %v113
    %v205 = vpop.f32.mrb[0].mxu0
    %v206 = vadd.f32 0.0, %v205
    %v207 = vpop.f32.mrb[0].mxu0
    %v208 = vadd.f32 0.0, %v207
    %209 = vmatprep.mubr.f32.mxu0 0.0
    %210 = vmatmul.mubr.f32.gmra.mrb[0].mxu0 %v116
    %v211 = vpop.f32.mrb[0].mxu0
    %v212 = vadd.f32 0.0, %v211
    %v213 = vpop.f32.mrb[0].mxu0
    %v214 = vadd.f32 0.0, %v213
    %215 = vmatprep.mubr.f32.mxu0 0.0
    %216 = vmatmul.mubr.f32.gmra.mrb[0].mxu0 %v119
    %v217 = vpop.f32.mrb[0].mxu0
    %v218 = vadd.f32 0.0, %v217
    %v219 = vpop.f32.mrb[0].mxu0
    %v220 = vadd.f32 0.0, %v219
    %221 = vmatprep.mubr.f32.mxu0 0.0
    %222 = vmatmul.mubr.f32.gmra.mrb[0].mxu0 %v122
    %v223 = vpop.f32.mrb[0].mxu0
    %v224 = vadd.f32 0.0, %v223
    %v225 = vpop.f32.mrb[0].mxu0
    %v226 = vadd.f32 0.0, %v225
    %227 = vmatprep.mubr.f32.mxu0 0.0
    %228 = vmatmul.mubr.f32.gmra.mrb[0].mxu0 %v125
    %v229 = vpop.f32.mrb[0].mxu0
    %v230 = vadd.f32 0.0, %v229
    %v231 = vpop.f32.mrb[0].mxu0
    %v232 = vadd.f32 0.0, %v231
    %233 = vmatprep.mubr.f32.mxu0 0.0
    %234 = vmatmul.mubr.f32.gmra.mrb[0].mxu0 %v128
    %v235 = vpop.f32.mrb[0].mxu0
    %v236 = vadd.f32 0.0, %v235
    %v237 = vpop.f32.mrb[0].mxu0
    %v238 = vadd.f32 0.0, %v237
    %239 = vmatprep.mubr.f32.mxu0 0.0
    %240 = vmatmul.mubr.f32.gmra.mrb[0].mxu0 %v131
    %v241 = vpop.f32.mrb[0].mxu0
    %v242 = vadd.f32 0.0, %v241
    %v243 = vpop.f32.mrb[0].mxu0
    %v244 = vadd.f32 0.0, %v243
    %245 = vdwg.mxu0
    %246 = vmatprep.subr.mxu0 %v63
    %247 = vmatpush1.msra.mxu0 %v62
    %248 = vmatprep.subr.mxu0 %v67
    %249 = vmatpush1.msra.mxu0 %v66
    %250 = vmatprep.subr.mxu0 %v71
    %251 = vmatpush1.msra.mxu0 %v70
    %252 = vmatprep.subr.mxu0 %v75
    %253 = vmatpush1.msra.mxu0 %v74
    %254 = vmatprep.subr.mxu0 0.0
    %255 = vmatpush1.msra.mxu0 0.0
    %256 = vmatprep.subr.mxu0 0.0
    %257 = vmatpush1.msra.mxu0 0.0
    %258 = vmatprep.subr.mxu0 0.0
    %259 = vmatpush1.msra.mxu0 0.0
    %260 = vmatprep.subr.mxu0 0.0
    %261 = vmatpush1.msra.mxu0 0.0
    %262 = vmatprep.subr.mxu0 0.0
    %263 = vmatpush1.msra.mxu0 0.0
    %264 = vmatprep.subr.mxu0 0.0
    %265 = vmatpush1.msra.mxu0 0.0
    %266 = vmatprep.subr.mxu0 0.0
    %267 = vmatpush1.msra.mxu0 0.0
    %268 = vmatprep.subr.mxu0 0.0
    %269 = vmatpush1.msra.mxu0 0.0
    %270 = vmatprep.subr.mxu0 0.0
    %271 = vmatpush1.msra.mxu0 0.0
    %272 = vmatprep.subr.mxu0 0.0
    %273 = vmatpush1.msra.mxu0 0.0
    %274 = vmatprep.subr.mxu0 0.0
    %275 = vmatpush1.msra.mxu0 0.0
    %276 = vmatprep.subr.mxu0 0.0
    %277 = vmatpush1.msra.mxu0 0.0
    %278 = vmatprep.subr.mxu0 0.0
    %279 = vmatpush1.msra.mxu0 0.0
    %280 = vmatprep.subr.mxu0 0.0
    %281 = vmatpush1.msra.mxu0 0.0
    %282 = vmatprep.subr.mxu0 0.0
    %283 = vmatpush1.msra.mxu0 0.0
    %284 = vmatprep.subr.mxu0 0.0
    %285 = vmatpush1.msra.mxu0 0.0
    %286 = vmatprep.subr.mxu0 0.0
    %287 = vmatpush1.msra.mxu0 0.0
    %288 = vmatprep.subr.mxu0 0.0
    %289 = vmatpush1.msra.mxu0 0.0
    %290 = vmatprep.subr.mxu0 0.0
    %291 = vmatpush1.msra.mxu0 0.0
    %292 = vmatprep.subr.mxu0 0.0
    %293 = vmatpush1.msra.mxu0 0.0
    %294 = vmatprep.subr.mxu0 0.0
    %295 = vmatpush1.msra.mxu0 0.0
    %296 = vmatprep.subr.mxu0 0.0
    %297 = vmatpush1.msra.mxu0 0.0
    %298 = vmatprep.subr.mxu0 0.0
    %299 = vmatpush1.msra.mxu0 0.0
    %300 = vmatprep.subr.mxu0 0.0
    %301 = vmatpush1.msra.mxu0 0.0
    %302 = vmatprep.subr.mxu0 0.0
    %303 = vmatpush1.msra.mxu0 0.0
    %304 = vmatprep.subr.mxu0 0.0
    %305 = vmatpush1.msra.mxu0 0.0
    %306 = vmatprep.subr.mxu0 0.0
    %307 = vmatpush1.msra.mxu0 0.0
    %308 = vmatprep.subr.mxu0 0.0
    %309 = vmatpush1.msra.mxu0 0.0
    %310 = vmatprep.mubr.f32.mxu0 0.0
    %311 = vmatmul.mubr.f32.gmra.mrb[0].mxu0 %v110
    %v312 = vpop.f32.mrb[0].mxu0
    %v313 = vadd.f32 0.0, %v312
    %v314 = vpop.f32.mrb[0].mxu0
    %v315 = vadd.f32 0.0, %v314
    %316 = vmatprep.mubr.f32.mxu0 0.0
    %317 = vmatmul.mubr.f32.gmra.mrb[0].mxu0 %v113
    %v318 = vpop.f32.mrb[0].mxu0
    %v319 = vadd.f32 0.0, %v318
    %v320 = vpop.f32.mrb[0].mxu0
    %v321 = vadd.f32 0.0, %v320
    %322 = vmatprep.mubr.f32.mxu0 0.0
    %323 = vmatmul.mubr.f32.gmra.mrb[0].mxu0 %v116
    %v324 = vpop.f32.mrb[0].mxu0
    %v325 = vadd.f32 0.0, %v324
    %v326 = vpop.f32.mrb[0].mxu0
    %v327 = vadd.f32 0.0, %v326
    %328 = vmatprep.mubr.f32.mxu0 0.0
    %329 = vmatmul.mubr.f32.gmra.mrb[0].mxu0 %v119
    %v330 = vpop.f32.mrb[0].mxu0
    %v331 = vadd.f32 0.0, %v330
    %v332 = vpop.f32.mrb[0].mxu0
    %v333 = vadd.f32 0.0, %v332
    %334 = vmatprep.mubr.f32.mxu0 0.0
    %335 = vmatmul.mubr.f32.gmra.mrb[0].mxu0 %v122
    %v336 = vpop.f32.mrb[0].mxu0
    %v337 = vadd.f32 0.0, %v336
    %v338 = vpop.f32.mrb[0].mxu0
    %v339 = vadd.f32 0.0, %v338
    %340 = vmatprep.mubr.f32.mxu0 0.0
    %341 = vmatmul.mubr.f32.gmra.mrb[0].mxu0 %v125
    %v342 = vpop.f32.mrb[0].mxu0
    %v343 = vadd.f32 0.0, %v342
    %v344 = vpop.f32.mrb[0].mxu0
    %v345 = vadd.f32 0.0, %v344
    %346 = vmatprep.mubr.f32.mxu0 0.0
    %347 = vmatmul.mubr.f32.gmra.mrb[0].mxu0 %v128
    %v348 = vpop.f32.mrb[0].mxu0
    %v349 = vadd.f32 0.0, %v348
    %v350 = vpop.f32.mrb[0].mxu0
    %v351 = vadd.f32 0.0, %v350
    %352 = vmatprep.mubr.f32.mxu0 0.0
    %353 = vmatmul.mubr.f32.gmra.mrb[0].mxu0 %v131
    %v354 = vpop.f32.mrb[0].mxu0
    %v355 = vadd.f32 0.0, %v354
    %v356 = vpop.f32.mrb[0].mxu0
    %v357 = vadd.f32 0.0, %v356
    %358 = vdwg.mxu0
    %v359 = vtanh.pop %v200
    %v360 = vtanh.pop %v202
    %v361 = vtanh.pop %v313
    %v362 = vtanh.pop %v315
    %v363 = vtanh.pop %v206
    %v364 = vtanh.pop %v208
    %v365 = vtanh.pop %v319
    %v366 = vtanh.pop %v321
    %v367 = vtanh.pop %v212
    %v368 = vtanh.pop %v214
    %v369 = vtanh.pop %v325
    %v370 = vtanh.pop %v327
    %v371 = vtanh.pop %v218
    %v372 = vtanh.pop %v220
    %v373 = vtanh.pop %v331
    %v374 = vtanh.pop %v333
    %v375 = vtanh.pop %v224
    %v376 = vtanh.pop %v226
    %v377 = vtanh.pop %v337
    %v378 = vtanh.pop %v339
    %v379 = vtanh.pop %v230
    %v380 = vtanh.pop %v232
    %v381 = vtanh.pop %v343
    %v382 = vtanh.pop %v345
    %v383 = vtanh.pop %v236
    %v384 = vtanh.pop %v238
    %v385 = vtanh.pop %v349
    %v386 = vtanh.pop %v351
    %v387 = vtanh.pop %v242
    %v388 = vtanh.pop %v244
    %v389 = vtanh.pop %v355
    %v390 = vtanh.pop %v357
    %v391 = vld [vmem:[#allocation2] sm:$0xff]
    %v392 = vld [vmem:[#allocation2 + $0x8] sm:$0xff]
    %v393 = vld [vmem:[#allocation2 + $0x10] sm:$0xff]
    %v394 = vld [vmem:[#allocation2 + $0x18] sm:$0xff]
    %vm395 = vcmask 523264
    %v397 = vsel %vm395, %v391, 0
    %v400 = vsel %vm395, %v392, 0
    %v403 = vsel %vm395, %v393, 0
    %v406 = vsel %vm395, %v394, 0
    %408 = vmatprep.subr.mxu0 %v360
    %409 = vmatpush1.msra.mxu0 %v359
    %410 = vmatprep.subr.mxu0 %v364
    %411 = vmatpush1.msra.mxu0 %v363
    %412 = vmatprep.subr.mxu0 %v368
    %413 = vmatpush1.msra.mxu0 %v367
    %414 = vmatprep.subr.mxu0 %v372
    %415 = vmatpush1.msra.mxu0 %v371
    %416 = vmatprep.subr.mxu0 %v376
    %417 = vmatpush1.msra.mxu0 %v375
    %418 = vmatprep.subr.mxu0 %v380
    %419 = vmatpush1.msra.mxu0 %v379
    %420 = vmatprep.subr.mxu0 %v384
    %421 = vmatpush1.msra.mxu0 %v383
    %422 = vmatprep.subr.mxu0 %v388
    %423 = vmatpush1.msra.mxu0 %v387
    %424 = vmatprep.subr.mxu0 0.0
    %425 = vmatpush1.msra.mxu0 0.0
    %426 = vmatprep.subr.mxu0 0.0
    %427 = vmatpush1.msra.mxu0 0.0
    %428 = vmatprep.subr.mxu0 0.0
    %429 = vmatpush1.msra.mxu0 0.0
    %430 = vmatprep.subr.mxu0 0.0
    %431 = vmatpush1.msra.mxu0 0.0
    %432 = vmatprep.subr.mxu0 0.0
    %433 = vmatpush1.msra.mxu0 0.0
    %434 = vmatprep.subr.mxu0 0.0
    %435 = vmatpush1.msra.mxu0 0.0
    %436 = vmatprep.subr.mxu0 0.0
    %437 = vmatpush1.msra.mxu0 0.0
    %438 = vmatprep.subr.mxu0 0.0
    %439 = vmatpush1.msra.mxu0 0.0
    %440 = vmatprep.subr.mxu0 0.0
    %441 = vmatpush1.msra.mxu0 0.0
    %442 = vmatprep.subr.mxu0 0.0
    %443 = vmatpush1.msra.mxu0 0.0
    %444 = vmatprep.subr.mxu0 0.0
    %445 = vmatpush1.msra.mxu0 0.0
    %446 = vmatprep.subr.mxu0 0.0
    %447 = vmatpush1.msra.mxu0 0.0
    %448 = vmatprep.subr.mxu0 0.0
    %449 = vmatpush1.msra.mxu0 0.0
    %450 = vmatprep.subr.mxu0 0.0
    %451 = vmatpush1.msra.mxu0 0.0
    %452 = vmatprep.subr.mxu0 0.0
    %453 = vmatpush1.msra.mxu0 0.0
    %454 = vmatprep.subr.mxu0 0.0
    %455 = vmatpush1.msra.mxu0 0.0
    %456 = vmatprep.subr.mxu0 0.0
    %457 = vmatpush1.msra.mxu0 0.0
    %458 = vmatprep.subr.mxu0 0.0
    %459 = vmatpush1.msra.mxu0 0.0
    %460 = vmatprep.subr.mxu0 0.0
    %461 = vmatpush1.msra.mxu0 0.0
    %462 = vmatprep.subr.mxu0 0.0
    %463 = vmatpush1.msra.mxu0 0.0
    %464 = vmatprep.subr.mxu0 0.0
    %465 = vmatpush1.msra.mxu0 0.0
    %466 = vmatprep.subr.mxu0 0.0
    %467 = vmatpush1.msra.mxu0 0.0
    %468 = vmatprep.subr.mxu0 0.0
    %469 = vmatpush1.msra.mxu0 0.0
    %470 = vmatprep.subr.mxu0 0.0
    %471 = vmatpush1.msra.mxu0 0.0
    %472 = vmatprep.mubr.f32.mxu0 0.0
    %473 = vmatmul.mubr.f32.gmra.mrb[0].mxu0 %v397
    %v474 = vpop.f32.mrb[0].mxu0
    %v475 = vadd.f32 0.0, %v474
    %v476 = vpop.f32.mrb[0].mxu0
    %v477 = vadd.f32 0.0, %v476
    %478 = vmatprep.mubr.f32.mxu0 0.0
    %479 = vmatmul.mubr.f32.gmra.mrb[0].mxu0 %v400
    %v480 = vpop.f32.mrb[0].mxu0
    %v481 = vadd.f32 0.0, %v480
    %v482 = vpop.f32.mrb[0].mxu0
    %v483 = vadd.f32 0.0, %v482
    %484 = vmatprep.mubr.f32.mxu0 0.0
    %485 = vmatmul.mubr.f32.gmra.mrb[0].mxu0 %v403
    %v486 = vpop.f32.mrb[0].mxu0
    %v487 = vadd.f32 0.0, %v486
    %v488 = vpop.f32.mrb[0].mxu0
    %v489 = vadd.f32 0.0, %v488
    %490 = vmatprep.mubr.f32.mxu0 0.0
    %491 = vmatmul.mubr.f32.gmra.mrb[0].mxu0 %v406
    %v492 = vpop.f32.mrb[0].mxu0
    %v493 = vadd.f32 0.0, %v492
    %v494 = vpop.f32.mrb[0].mxu0
    %v495 = vadd.f32 0.0, %v494
    %496 = vdwg.mxu0
    %497 = vmatprep.subr.mxu0 %v362
    %498 = vmatpush1.msra.mxu0 %v361
    %499 = vmatprep.subr.mxu0 %v366
    %500 = vmatpush1.msra.mxu0 %v365
    %501 = vmatprep.subr.mxu0 %v370
    %502 = vmatpush1.msra.mxu0 %v369
    %503 = vmatprep.subr.mxu0 %v374
    %504 = vmatpush1.msra.mxu0 %v373
    %505 = vmatprep.subr.mxu0 %v378
    %506 = vmatpush1.msra.mxu0 %v377
    %507 = vmatprep.subr.mxu0 %v382
    %508 = vmatpush1.msra.mxu0 %v381
    %509 = vmatprep.subr.mxu0 %v386
    %510 = vmatpush1.msra.mxu0 %v385
    %511 = vmatprep.subr.mxu0 %v390
    %512 = vmatpush1.msra.mxu0 %v389
    %513 = vmatprep.subr.mxu0 0.0
    %514 = vmatpush1.msra.mxu0 0.0
    %515 = vmatprep.subr.mxu0 0.0
    %516 = vmatpush1.msra.mxu0 0.0
    %517 = vmatprep.subr.mxu0 0.0
    %518 = vmatpush1.msra.mxu0 0.0
    %519 = vmatprep.subr.mxu0 0.0
    %520 = vmatpush1.msra.mxu0 0.0
    %521 = vmatprep.subr.mxu0 0.0
    %522 = vmatpush1.msra.mxu0 0.0
    %523 = vmatprep.subr.mxu0 0.0
    %524 = vmatpush1.msra.mxu0 0.0
    %525 = vmatprep.subr.mxu0 0.0
    %526 = vmatpush1.msra.mxu0 0.0
    %527 = vmatprep.subr.mxu0 0.0
    %528 = vmatpush1.msra.mxu0 0.0
    %529 = vmatprep.subr.mxu0 0.0
    %530 = vmatpush1.msra.mxu0 0.0
    %531 = vmatprep.subr.mxu0 0.0
    %532 = vmatpush1.msra.mxu0 0.0
    %533 = vmatprep.subr.mxu0 0.0
    %534 = vmatpush1.msra.mxu0 0.0
    %535 = vmatprep.subr.mxu0 0.0
    %536 = vmatpush1.msra.mxu0 0.0
    %537 = vmatprep.subr.mxu0 0.0
    %538 = vmatpush1.msra.mxu0 0.0
    %539 = vmatprep.subr.mxu0 0.0
    %540 = vmatpush1.msra.mxu0 0.0
    %541 = vmatprep.subr.mxu0 0.0
    %542 = vmatpush1.msra.mxu0 0.0
    %543 = vmatprep.subr.mxu0 0.0
    %544 = vmatpush1.msra.mxu0 0.0
    %545 = vmatprep.subr.mxu0 0.0
    %546 = vmatpush1.msra.mxu0 0.0
    %547 = vmatprep.subr.mxu0 0.0
    %548 = vmatpush1.msra.mxu0 0.0
    %549 = vmatprep.subr.mxu0 0.0
    %550 = vmatpush1.msra.mxu0 0.0
    %551 = vmatprep.subr.mxu0 0.0
    %552 = vmatpush1.msra.mxu0 0.0
    %553 = vmatprep.subr.mxu0 0.0
    %554 = vmatpush1.msra.mxu0 0.0
    %555 = vmatprep.subr.mxu0 0.0
    %556 = vmatpush1.msra.mxu0 0.0
    %557 = vmatprep.subr.mxu0 0.0
    %558 = vmatpush1.msra.mxu0 0.0
    %559 = vmatprep.subr.mxu0 0.0
    %560 = vmatpush1.msra.mxu0 0.0
    %561 = vmatprep.mubr.f32.mxu0 0.0
    %562 = vmatmul.mubr.f32.gmra.mrb[0].mxu0 %v397
    %v563 = vpop.f32.mrb[0].mxu0
    %v564 = vadd.f32 0.0, %v563
    %v565 = vpop.f32.mrb[0].mxu0
    %v566 = vadd.f32 0.0, %v565
    %567 = vmatprep.mubr.f32.mxu0 0.0
    %568 = vmatmul.mubr.f32.gmra.mrb[0].mxu0 %v400
    %v569 = vpop.f32.mrb[0].mxu0
    %v570 = vadd.f32 0.0, %v569
    %v571 = vpop.f32.mrb[0].mxu0
    %v572 = vadd.f32 0.0, %v571
    %573 = vmatprep.mubr.f32.mxu0 0.0
    %574 = vmatmul.mubr.f32.gmra.mrb[0].mxu0 %v403
    %v575 = vpop.f32.mrb[0].mxu0
    %v576 = vadd.f32 0.0, %v575
    %v577 = vpop.f32.mrb[0].mxu0
    %v578 = vadd.f32 0.0, %v577
    %579 = vmatprep.mubr.f32.mxu0 0.0
    %580 = vmatmul.mubr.f32.gmra.mrb[0].mxu0 %v406
    %v581 = vpop.f32.mrb[0].mxu0
    %v582 = vadd.f32 0.0, %v581
    %v583 = vpop.f32.mrb[0].mxu0
    %v584 = vadd.f32 0.0, %v583
    %585 = vdwg.mxu0
    %586 = vst [vmem:[#allocation8] sm:$0xff] %v475
    %587 = vst [vmem:[#allocation8 + $0x8] sm:$0xff] %v477
    %588 = vst [vmem:[#allocation8 + $0x10] sm:$0xff] %v564
    %589 = vst [vmem:[#allocation8 + $0x18] sm:$0xff] %v566
    %590 = vst [vmem:[#allocation8 + $0x20] sm:$0xff] %v481
    %591 = vst [vmem:[#allocation8 + $0x28] sm:$0xff] %v483
    %592 = vst [vmem:[#allocation8 + $0x30] sm:$0xff] %v570
    %593 = vst [vmem:[#allocation8 + $0x38] sm:$0xff] %v572
    %594 = vst [vmem:[#allocation8 + $0x40] sm:$0xff] %v487
    %595 = vst [vmem:[#allocation8 + $0x48] sm:$0xff] %v489
    %596 = vst [vmem:[#allocation8 + $0x50] sm:$0xff] %v576
    %597 = vst [vmem:[#allocation8 + $0x58] sm:$0xff] %v578
    %598 = vst [vmem:[#allocation8 + $0x60] sm:$0xff] %v493
    %599 = vst [vmem:[#allocation8 + $0x68] sm:$0xff] %v495
    %600 = vst [vmem:[#allocation8 + $0x70] sm:$0xff] %v582
    %601 = vst [vmem:[#allocation8 + $0x78] sm:$0xff] %v584
    // Predicated region
    $region26: #{tpu_custom_call.1} parent=1 // pred_check
      _
    $region27: #{tpu_custom_call.1} parent=1 // pred_check_branch
      %603 = sbr.rel (0) target = $region29
    $region28: #{tpu_custom_call.1} parent=1 // pred_region
      %s605 = ssub.s32 2048, 2048
      %606 = vsyncadd [#allocation4], %s605
      %s607 = sshll.u32 [#allocation8], 4
      %s608 = int_to_ptr.vmem [resolvable:$true] %s607
      %613 = dma.vmem_to_hbm [thread:$0]  %s608, 2048, %s3, [#allocation4], 512, 512, 32
    $region29: #{tpu_custom_call.1} parent=1 // pred_fallthru
      _
    // Predicated region
    $region30: #{tpu_custom_call.1} parent=1 // pred_check
      _
    $region31: #{tpu_custom_call.1} parent=1 // pred_check_branch
      %615 = sbr.rel (0) target = $region33
    $region32: #{tpu_custom_call.1} parent=1 // pred_region
      %616 = dma.done [#allocation4], 2048
    $region33: #{tpu_custom_call.1} parent=1 // pred_fallthru
      _
    %617 = vsyncpa [#allocation3], 1
    %618 = vsyncpa [#allocation6], 1
    %619 = vsyncpa [#allocation4], 1

</llo_original>
